<compile_context>
chip_gen: v7x
topology: tpu7x:2x2x1
jax: 0.10.0
libtpu: 0.0.40
codegen_flags: <defaults>
</compile_context>

<pallas_src>
import functools

import jax
import jax.numpy as jnp
from jax.experimental import pallas as pl
from jax.experimental.pallas import tpu as pltpu

HIDDEN_DIM = 100        # true hidden width of the PyTorch module
HP = 128                # hidden width padded to the lane width
LEAKY_SLOPE = 0.01      # nn.LeakyReLU default
LN_EPS = 1e-5           # nn.LayerNorm default
NEG_BIG = -1e30         # bias for padded action lanes (acts as -inf in softmax)


def _round_up(v, m):
    return (v + m - 1) // m * m


def _leaky_relu(x):
    return jnp.where(x >= 0, x, LEAKY_SLOPE * x)


def _layernorm_padded(h, gamma, beta, mask, inv_n):
    # h's padded lanes are exactly zero (zero-padded upstream weights/biases),
    # so the sum over all 128 lanes equals the sum over the true 100 lanes.
    mu = jnp.sum(h, axis=-1, keepdims=True) * inv_n
    xc = (h - mu) * mask                                     # zero padded lanes
    var = jnp.sum(xc * xc, axis=-1, keepdims=True) * inv_n   # biased (PyTorch)
    inv = jax.lax.rsqrt(var + LN_EPS)
    return xc * inv * gamma + beta                           # padded lanes stay 0


def actor_kernel(x_ref, w1_ref, w2_ref, wpi_ref, tbl_ref, out_ref):
    # Lane mask selecting the true hidden width (lanes 100..127 are padding).
    lane = jax.lax.broadcasted_iota(jnp.int32, (1, HP), 1)
    mask = (lane < HIDDEN_DIM).astype(jnp.float32)
    inv_n = jnp.float32(1.0 / HIDDEN_DIM)

    # Consolidated parameter table: rows = b1,g1,be1,b2,g2,be2,bpi,pad.
    tbl = tbl_ref[...]                                       # (8, AP) f32
    b1, g1, be1 = tbl[0:1, :HP], tbl[1:2, :HP], tbl[2:3, :HP]
    b2, g2, be2 = tbl[3:4, :HP], tbl[4:5, :HP], tbl[5:6, :HP]
    bpi = tbl[6:7, :]                                        # (1, AP)

    x = x_ref[...]                                           # f32 batch tile

    # Layer 1: Linear -> LeakyReLU -> LayerNorm
    h = jnp.dot(x, w1_ref[...], preferred_element_type=jnp.float32) + b1
    h = _leaky_relu(h)
    h = _layernorm_padded(h, g1, be1, mask, inv_n)

    # Layer 2: Linear -> LeakyReLU -> LayerNorm
    h = jnp.dot(h, w2_ref[...], preferred_element_type=jnp.float32) + b2
    h = _leaky_relu(h)
    h = _layernorm_padded(h, g2, be2, mask, inv_n)

    # Policy head; padded action lanes carry bias NEG_BIG -> excluded by softmax.
    logit = jnp.dot(h, wpi_ref[...], preferred_element_type=jnp.float32) + bpi

    # Per-row logsumexp (numerically stable); padded lanes underflow to 0 in exp.
    m = jnp.max(logit, axis=-1, keepdims=True)
    lse = m + jnp.log(jnp.sum(jnp.exp(logit - m), axis=-1, keepdims=True))

    # Single lane-dense output slab: logits + lse stashed in the last padded
    # lane (AP >= A+1 by construction) -> halves HBM writeback vs two slabs.
    ap = logit.shape[-1]
    lane_a = jax.lax.broadcasted_iota(jnp.int32, logit.shape, 1)
    out_ref[...] = jnp.where(lane_a == ap - 1, lse, logit)


def prepare_params(params):
    """Pad PyTorch-shaped params to lane-dense f32 ONCE (outside the per-step
    forward).  Returns (w1, w2, wpi, table) ready for actor_nw_forward."""
    i_dim = params["w1"].shape[0]
    A = params["wpi"].shape[1]
    AP = _round_up(A + 1, 128)   # +1 guarantees a spare lane for the lse stash

    def pad2d(w, rows, cols):
        out = jnp.zeros((rows, cols), jnp.float32)
        return out.at[: w.shape[0], : w.shape[1]].set(w.astype(jnp.float32))

    w1 = pad2d(params["w1"], i_dim, HP)
    w2 = pad2d(params["w2"], HP, HP)
    wpi = pad2d(params["wpi"], HP, AP)

    tbl = jnp.zeros((8, AP), jnp.float32)
    for r, name in enumerate(("b1", "g1", "be1", "b2", "g2", "be2")):
        tbl = tbl.at[r, :HIDDEN_DIM].set(
            params[name].reshape(-1).astype(jnp.float32))
    tbl = tbl.at[6, :].set(NEG_BIG)
    tbl = tbl.at[6, :A].set(params["bpi"].reshape(-1).astype(jnp.float32))

    return w1, w2, wpi, tbl


@functools.partial(jax.jit, static_argnames=("num_action", "tile_b"))
def actor_nw_forward(x, w1, w2, wpi, tbl, *, num_action, tile_b=1024):
    """x: [B, iDim] float; padded params from prepare_params.
    Returns (pi_logit[B, A], lg_sm[B, A])."""
    B, i_dim = x.shape
    AP = wpi.shape[1]
    A = num_action

    x = x.astype(jnp.float32)

    # Batch tiling: sublane (8) aligned.  Ensure >= 2 grid steps when the batch
    # is big enough so v7x's two TensorCores both get work (grid axis is
    # "parallel"); v5e/v6e (1 TC) are unaffected.
    b_al = _round_up(B, 8)
    tb = min(_round_up(tile_b, 8), b_al)
    if tb == b_al and b_al >= 16:
        tb = _round_up((b_al + 1) // 2, 8)
    b_pad = _round_up(B, tb)
    grid = (b_pad // tb,)

    # Pad the batch only if actually needed (no extra XLA pass otherwise).
    x_in = x if b_pad == B else jnp.zeros((b_pad, i_dim), jnp.float32).at[:B].set(x)

    def const_spec(shape):
        return pl.BlockSpec(shape, lambda i: (0, 0))   # VMEM-resident across grid

    in_specs = [
        pl.BlockSpec((tb, i_dim), lambda i: (i, 0)),   # x: batch-tiled
        const_spec((i_dim, HP)),                       # w1
        const_spec((HP, HP)),                          # w2
        const_spec((HP, AP)),                          # wpi
        const_spec((8, AP)),                           # bias/gamma/beta table
    ]
    out_specs = pl.BlockSpec((tb, AP), lambda i: (i, 0))
    out_shape = jax.ShapeDtypeStruct((b_pad, AP), jnp.float32)

    weight_bytes = (i_dim * HP + HP * HP + HP * AP + 8 * AP) * 4
    cost = pl.CostEstimate(
        flops=2 * b_pad * (i_dim * HP + HP * HP + HP * AP),
        transcendentals=b_pad * (AP + 3),              # exp per lane + log + 2x rsqrt
        bytes_accessed=x_in.size * 4 + b_pad * AP * 4 + weight_bytes,
    )

    slab = pl.pallas_call(
        actor_kernel,
        out_shape=out_shape,
        grid=grid,
        in_specs=in_specs,
        out_specs=out_specs,
        compiler_params=pltpu.CompilerParams(
            dimension_semantics=("parallel",)),
        cost_estimate=cost,
    )(x_in, w1, w2, wpi, tbl)

    # Reconstruct log-softmax from the stashed per-row logsumexp on the small
    # sliced (B, A) data (consumers wanting zero extra passes can use `slab`).
    pi_logit = slab[:B, :A]
    lg_sm = pi_logit - slab[:B, AP - 1:AP]
    return pi_logit, lg_sm


def init_params(key, ip_dim, num_action):
    """Deterministic synthetic init; shapes match the PyTorch module (unpadded)."""
    H = HIDDEN_DIM
    k1, k2, k3 = jax.random.split(key, 3)

    def lin(k, fan_in, fan_out):
        bound = 1.0 / jnp.sqrt(jnp.float32(fan_in))
        kw, kb = jax.random.split(k)
        w = jax.random.uniform(kw, (fan_in, fan_out), jnp.float32, -bound, bound)
        b = jax.random.uniform(kb, (fan_out,), jnp.float32, -bound, bound)
        return w, b

    w1, b1 = lin(k1, ip_dim, H)
    w2, b2 = lin(k2, H, H)
    wpi, bpi = lin(k3, H, num_action)
    return {
        "w1": w1, "b1": b1,
        "g1": jnp.ones((H,), jnp.float32), "be1": jnp.zeros((H,), jnp.float32),
        "w2": w2, "b2": b2,
        "g2": jnp.ones((H,), jnp.float32), "be2": jnp.zeros((H,), jnp.float32),
        "wpi": wpi, "bpi": bpi,
    }


def actor_ref(x, p):
    """Pure-JAX f32 reference matching the PyTorch forward."""
    def ln(h, g, b):
        mu = jnp.mean(h, -1, keepdims=True)
        var = jnp.mean((h - mu) ** 2, -1, keepdims=True)
        return (h - mu) * jax.lax.rsqrt(var + LN_EPS) * g + b

    h = x @ p["w1"] + p["b1"]
    h = jnp.where(h >= 0, h, LEAKY_SLOPE * h)
    h = ln(h, p["g1"], p["be1"])
    h = h @ p["w2"] + p["b2"]
    h = jnp.where(h >= 0, h, LEAKY_SLOPE * h)
    h = ln(h, p["g2"], p["be2"])
    logit = h @ p["wpi"] + p["bpi"]
    return logit, jax.nn.log_softmax(logit, axis=-1)


if __name__ == "__main__":
    B, IP_DIM, NUM_ACTION = 8, 32, 5

    key = jax.random.PRNGKey(0)
    kx, kp = jax.random.split(key)
    x = jax.random.normal(kx, (B, IP_DIM), jnp.float32)
    params = init_params(kp, IP_DIM, NUM_ACTION)

    # Hoisted: pad/pack parameters once, outside the per-step forward.
    padded = prepare_params(params)

    pi_logit, lg_sm = actor_nw_forward(x, *padded, num_action=NUM_ACTION)
    jax.block_until_ready((pi_logit, lg_sm))

    assert pi_logit.shape == (B, NUM_ACTION)
    assert lg_sm.shape == (B, NUM_ACTION)

    # log_softmax rows must sum to ~1 after exp
    row_sums = jnp.sum(jnp.exp(lg_sm), axis=-1)
    assert bool(jnp.allclose(row_sums, 1.0, atol=1e-5))

    # tolerance vs f32 reference (TPU matmul default precision)
    ref_logit, ref_lgsm = actor_ref(x, params)
    assert bool(jnp.allclose(pi_logit, ref_logit, atol=5e-2, rtol=5e-2))
    assert bool(jnp.allclose(lg_sm, ref_lgsm, atol=5e-2, rtol=5e-2))

    print("KERNEL_OK")
</pallas_src>

<mosaic_0001>
module attributes {stable_mosaic.version = 11 : i64} {
  func.func @actor_kernel(%arg0: i32, %arg1: memref<8x32xf32, #tpu.memory_space<vmem>>, %arg2: memref<32x128xf32, #tpu.memory_space<vmem>>, %arg3: memref<128x128xf32, #tpu.memory_space<vmem>>, %arg4: memref<128x128xf32, #tpu.memory_space<vmem>>, %arg5: memref<8x128xf32, #tpu.memory_space<vmem>>, %arg6: memref<8x128xf32, #tpu.memory_space<vmem>>) attributes {dimension_semantics = [#tpu.dimension_semantics<parallel>], iteration_bounds = array<i64: 1>, scalar_prefetch = 0 : i64, scratch_operands = 0 : i64, tpu.core_type = #tpu.core_type<tc>, window_params = [{transform_indices = @transform_0, window_bounds = array<i64: 8, 32>}, {pipeline_mode = #tpu.pipeline_mode<synchronous>, transform_indices = @transform_1, window_bounds = array<i64: 32, 128>}, {pipeline_mode = #tpu.pipeline_mode<synchronous>, transform_indices = @transform_2, window_bounds = array<i64: 128, 128>}, {pipeline_mode = #tpu.pipeline_mode<synchronous>, transform_indices = @transform_3, window_bounds = array<i64: 128, 128>}, {pipeline_mode = #tpu.pipeline_mode<synchronous>, transform_indices = @transform_4, window_bounds = array<i64: 8, 128>}, {transform_indices = @transform_5, window_bounds = array<i64: 8, 128>}]} {
    %0 = tpu.iota {dimensions = array<i32: 1>} : vector<1x128xi32>
    %c100_i32 = arith.constant 100 : i32
    %1 = vector.broadcast %c100_i32 : i32 to vector<1x128xi32>
    %2 = arith.cmpi slt, %0, %1 : vector<1x128xi32>
    %3 = arith.extui %2 : vector<1x128xi1> to vector<1x128xi32>
    %4 = arith.sitofp %3 : vector<1x128xi32> to vector<1x128xf32>
    %c0 = arith.constant 0 : index
    %c0_0 = arith.constant 0 : index
    %5 = vector.load %arg5[%c0, %c0_0] : memref<8x128xf32, #tpu.memory_space<vmem>>, vector<8x128xf32>
    %6 = vector.extract_strided_slice %5 {offsets = [0, 0], sizes = [1, 128], strides = [1, 1]} : vector<8x128xf32> to vector<1x128xf32>
    %7 = vector.extract_strided_slice %5 {offsets = [1, 0], sizes = [1, 128], strides = [1, 1]} : vector<8x128xf32> to vector<1x128xf32>
    %8 = vector.extract_strided_slice %5 {offsets = [2, 0], sizes = [1, 128], strides = [1, 1]} : vector<8x128xf32> to vector<1x128xf32>
    %9 = vector.extract_strided_slice %5 {offsets = [3, 0], sizes = [1, 128], strides = [1, 1]} : vector<8x128xf32> to vector<1x128xf32>
    %10 = vector.extract_strided_slice %5 {offsets = [4, 0], sizes = [1, 128], strides = [1, 1]} : vector<8x128xf32> to vector<1x128xf32>
    %11 = vector.extract_strided_slice %5 {offsets = [5, 0], sizes = [1, 128], strides = [1, 1]} : vector<8x128xf32> to vector<1x128xf32>
    %12 = vector.extract_strided_slice %5 {offsets = [6, 0], sizes = [1, 128], strides = [1, 1]} : vector<8x128xf32> to vector<1x128xf32>
    %c0_1 = arith.constant 0 : index
    %c0_2 = arith.constant 0 : index
    %13 = vector.load %arg1[%c0_1, %c0_2] : memref<8x32xf32, #tpu.memory_space<vmem>>, vector<8x32xf32>
    %c0_3 = arith.constant 0 : index
    %c0_4 = arith.constant 0 : index
    %14 = vector.load %arg2[%c0_3, %c0_4] : memref<32x128xf32, #tpu.memory_space<vmem>>, vector<32x128xf32>
    %cst = arith.constant dense<0.000000e+00> : vector<8x128xf32>
    %15 = tpu.matmul %13, %14, %cst {dimension_numbers = #tpu.dot_dimension_numbers<[1], [0], [0], [1], [0, 0, 1, 1], [], []>} : vector<8x32xf32>, vector<32x128xf32>, vector<8x128xf32> -> vector<8x128xf32>
    %16 = vector.broadcast %6 : vector<1x128xf32> to vector<8x128xf32>
    %17 = arith.addf %15, %16 : vector<8x128xf32>
    %cst_5 = arith.constant 0.000000e+00 : f32
    %18 = vector.broadcast %cst_5 : f32 to vector<8x128xf32>
    %19 = arith.cmpf oge, %17, %18 : vector<8x128xf32>
    %cst_6 = arith.constant 0.00999999977 : f32
    %20 = vector.broadcast %cst_6 : f32 to vector<8x128xf32>
    %21 = arith.mulf %20, %17 : vector<8x128xf32>
    %22 = arith.select %19, %17, %21 : vector<8x128xi1>, vector<8x128xf32>
    %cst_7 = arith.constant dense<0.000000e+00> : vector<8xf32>
    %23 = vector.multi_reduction <add>, %22, %cst_7 [1] : vector<8x128xf32> to vector<8xf32>
    %24 = vector.shape_cast %23 : vector<8xf32> to vector<8x1xf32>
    %cst_8 = arith.constant 0.00999999977 : f32
    %25 = vector.broadcast %cst_8 : f32 to vector<8x1xf32>
    %26 = arith.mulf %24, %25 : vector<8x1xf32>
    %27 = vector.broadcast %26 : vector<8x1xf32> to vector<8x128xf32>
    %28 = arith.subf %22, %27 : vector<8x128xf32>
    %29 = vector.broadcast %4 : vector<1x128xf32> to vector<8x128xf32>
    %30 = arith.mulf %28, %29 : vector<8x128xf32>
    %31 = arith.mulf %30, %30 : vector<8x128xf32>
    %cst_9 = arith.constant dense<0.000000e+00> : vector<8xf32>
    %32 = vector.multi_reduction <add>, %31, %cst_9 [1] : vector<8x128xf32> to vector<8xf32>
    %33 = vector.shape_cast %32 : vector<8xf32> to vector<8x1xf32>
    %cst_10 = arith.constant 0.00999999977 : f32
    %34 = vector.broadcast %cst_10 : f32 to vector<8x1xf32>
    %35 = arith.mulf %33, %34 : vector<8x1xf32>
    %cst_11 = arith.constant 9.99999974E-6 : f32
    %36 = vector.broadcast %cst_11 : f32 to vector<8x1xf32>
    %37 = arith.addf %35, %36 : vector<8x1xf32>
    %38 = math.rsqrt %37 : vector<8x1xf32>
    %39 = vector.broadcast %38 : vector<8x1xf32> to vector<8x128xf32>
    %40 = arith.mulf %30, %39 : vector<8x128xf32>
    %41 = vector.broadcast %7 : vector<1x128xf32> to vector<8x128xf32>
    %42 = arith.mulf %40, %41 : vector<8x128xf32>
    %43 = vector.broadcast %8 : vector<1x128xf32> to vector<8x128xf32>
    %44 = arith.addf %42, %43 : vector<8x128xf32>
    %c0_12 = arith.constant 0 : index
    %c0_13 = arith.constant 0 : index
    %45 = vector.load %arg3[%c0_12, %c0_13] : memref<128x128xf32, #tpu.memory_space<vmem>>, vector<128x128xf32>
    %cst_14 = arith.constant dense<0.000000e+00> : vector<8x128xf32>
    %46 = tpu.matmul %44, %45, %cst_14 {dimension_numbers = #tpu.dot_dimension_numbers<[1], [0], [0], [1], [0, 0, 1, 1], [], []>} : vector<8x128xf32>, vector<128x128xf32>, vector<8x128xf32> -> vector<8x128xf32>
    %47 = vector.broadcast %9 : vector<1x128xf32> to vector<8x128xf32>
    %48 = arith.addf %46, %47 : vector<8x128xf32>
    %cst_15 = arith.constant 0.000000e+00 : f32
    %49 = vector.broadcast %cst_15 : f32 to vector<8x128xf32>
    %50 = arith.cmpf oge, %48, %49 : vector<8x128xf32>
    %cst_16 = arith.constant 0.00999999977 : f32
    %51 = vector.broadcast %cst_16 : f32 to vector<8x128xf32>
    %52 = arith.mulf %51, %48 : vector<8x128xf32>
    %53 = arith.select %50, %48, %52 : vector<8x128xi1>, vector<8x128xf32>
    %cst_17 = arith.constant dense<0.000000e+00> : vector<8xf32>
    %54 = vector.multi_reduction <add>, %53, %cst_17 [1] : vector<8x128xf32> to vector<8xf32>
    %55 = vector.shape_cast %54 : vector<8xf32> to vector<8x1xf32>
    %cst_18 = arith.constant 0.00999999977 : f32
    %56 = vector.broadcast %cst_18 : f32 to vector<8x1xf32>
    %57 = arith.mulf %55, %56 : vector<8x1xf32>
    %58 = vector.broadcast %57 : vector<8x1xf32> to vector<8x128xf32>
    %59 = arith.subf %53, %58 : vector<8x128xf32>
    %60 = vector.broadcast %4 : vector<1x128xf32> to vector<8x128xf32>
    %61 = arith.mulf %59, %60 : vector<8x128xf32>
    %62 = arith.mulf %61, %61 : vector<8x128xf32>
    %cst_19 = arith.constant dense<0.000000e+00> : vector<8xf32>
    %63 = vector.multi_reduction <add>, %62, %cst_19 [1] : vector<8x128xf32> to vector<8xf32>
    %64 = vector.shape_cast %63 : vector<8xf32> to vector<8x1xf32>
    %cst_20 = arith.constant 0.00999999977 : f32
    %65 = vector.broadcast %cst_20 : f32 to vector<8x1xf32>
    %66 = arith.mulf %64, %65 : vector<8x1xf32>
    %cst_21 = arith.constant 9.99999974E-6 : f32
    %67 = vector.broadcast %cst_21 : f32 to vector<8x1xf32>
    %68 = arith.addf %66, %67 : vector<8x1xf32>
    %69 = math.rsqrt %68 : vector<8x1xf32>
    %70 = vector.broadcast %69 : vector<8x1xf32> to vector<8x128xf32>
    %71 = arith.mulf %61, %70 : vector<8x128xf32>
    %72 = vector.broadcast %10 : vector<1x128xf32> to vector<8x128xf32>
    %73 = arith.mulf %71, %72 : vector<8x128xf32>
    %74 = vector.broadcast %11 : vector<1x128xf32> to vector<8x128xf32>
    %75 = arith.addf %73, %74 : vector<8x128xf32>
    %c0_22 = arith.constant 0 : index
    %c0_23 = arith.constant 0 : index
    %76 = vector.load %arg4[%c0_22, %c0_23] : memref<128x128xf32, #tpu.memory_space<vmem>>, vector<128x128xf32>
    %cst_24 = arith.constant dense<0.000000e+00> : vector<8x128xf32>
    %77 = tpu.matmul %75, %76, %cst_24 {dimension_numbers = #tpu.dot_dimension_numbers<[1], [0], [0], [1], [0, 0, 1, 1], [], []>} : vector<8x128xf32>, vector<128x128xf32>, vector<8x128xf32> -> vector<8x128xf32>
    %78 = vector.broadcast %12 : vector<1x128xf32> to vector<8x128xf32>
    %79 = arith.addf %77, %78 : vector<8x128xf32>
    %cst_25 = arith.constant dense<0xFF800000> : vector<8xf32>
    %80 = vector.multi_reduction <maximumf>, %79, %cst_25 [1] : vector<8x128xf32> to vector<8xf32>
    %81 = vector.shape_cast %80 : vector<8xf32> to vector<8x1xf32>
    %82 = vector.broadcast %81 : vector<8x1xf32> to vector<8x128xf32>
    %83 = arith.subf %79, %82 : vector<8x128xf32>
    %84 = math.exp %83 : vector<8x128xf32>
    %cst_26 = arith.constant dense<0.000000e+00> : vector<8xf32>
    %85 = vector.multi_reduction <add>, %84, %cst_26 [1] : vector<8x128xf32> to vector<8xf32>
    %86 = vector.shape_cast %85 : vector<8xf32> to vector<8x1xf32>
    %87 = math.log %86 : vector<8x1xf32>
    %88 = arith.addf %81, %87 : vector<8x1xf32>
    %89 = tpu.iota {dimensions = array<i32: 1>} : vector<8x128xi32>
    %c127_i32 = arith.constant 127 : i32
    %90 = vector.broadcast %c127_i32 : i32 to vector<8x128xi32>
    %91 = arith.cmpi eq, %89, %90 : vector<8x128xi32>
    %92 = vector.shape_cast %88 : vector<8x1xf32> to vector<8x1xf32>
    %93 = vector.broadcast %92 : vector<8x1xf32> to vector<8x128xf32>
    %94 = arith.select %91, %93, %79 : vector<8x128xi1>, vector<8x128xf32>
    %c0_27 = arith.constant 0 : index
    %c0_28 = arith.constant 0 : index
    %95 = vector.load %arg6[%c0_27, %c0_28] : memref<8x128xf32, #tpu.memory_space<vmem>>, vector<8x128xf32>
    tpu.vector_store %arg6[%c0_27, %c0_28], %94 {strides = array<i32>} : memref<8x128xf32, #tpu.memory_space<vmem>>, vector<8x128xf32>,
    return
  }
  func.func @transform_0(%arg0: i32) -> (i32, i32) {
    %c0_i32 = arith.constant 0 : i32
    %c0_i32_0 = arith.constant 0 : i32
    return %arg0, %c0_i32 : i32, i32
  }
  func.func @transform_1(%arg0: i32) -> (i32, i32) {
    %c0_i32 = arith.constant 0 : i32
    %c0_i32_0 = arith.constant 0 : i32
    %c0_i32_1 = arith.constant 0 : i32
    return %c0_i32, %c0_i32_0 : i32, i32
  }
  func.func @transform_2(%arg0: i32) -> (i32, i32) {
    %c0_i32 = arith.constant 0 : i32
    %c0_i32_0 = arith.constant 0 : i32
    %c0_i32_1 = arith.constant 0 : i32
    return %c0_i32, %c0_i32_0 : i32, i32
  }
  func.func @transform_3(%arg0: i32) -> (i32, i32) {
    %c0_i32 = arith.constant 0 : i32
    %c0_i32_0 = arith.constant 0 : i32
    %c0_i32_1 = arith.constant 0 : i32
    return %c0_i32, %c0_i32_0 : i32, i32
  }
  func.func @transform_4(%arg0: i32) -> (i32, i32) {
    %c0_i32 = arith.constant 0 : i32
    %c0_i32_0 = arith.constant 0 : i32
    %c0_i32_1 = arith.constant 0 : i32
    return %c0_i32, %c0_i32_0 : i32, i32
  }
  func.func @transform_5(%arg0: i32) -> (i32, i32) {
    %c0_i32 = arith.constant 0 : i32
    %c0_i32_0 = arith.constant 0 : i32
    return %arg0, %c0_i32 : i32, i32
  }
}

</mosaic_0001>

<llo_original>
// kernel: actor_nw_forward.1
$region0: #{actor_nw_forward.1}
  #allocation0 [shape = 'u32[]', space=smem, size = 0x4, offset = 0x4, fixed_abs, tag = 'smem constant byte address 0x4 - core index']
  #allocation1 [shape = 'u32[144,128]{1,0:T(1,128)}', space=vmem, size = 0x12000, scoped, tag = 'internal scratch']
  %s0 = inlined_call_operand.hbm [shape: f32[8,32], index: 0, kind: input, shape index: {}]
  %s1 = inlined_call_operand.hbm [shape: f32[32,128], index: 1, kind: input, shape index: {}]
  %s2 = inlined_call_operand.hbm [shape: f32[128,128], index: 2, kind: input, shape index: {}]
  %s3 = inlined_call_operand.hbm [shape: f32[128,128], index: 3, kind: input, shape index: {}]
  %s4 = inlined_call_operand.vmem [shape: f32[8,128], index: 4, kind: input, shape index: {}]
  %s5 = inlined_call_operand.vmem [shape: f32[8,128], index: 5, kind: output, shape index: {}]
  %s6 = sld [smem:[#allocation0]]
  $region46: #{actor_nw_forward.1} parent=0
    _
  %s8 = ssub.s32 1, %s6
  %s9 = scalar_select 0, %s8, %s6
  $region1: #{actor_nw_forward.1} parent=0
    #allocation2 [shape = 'u8[4096]{0}', space=vmem, size = 0x1000, scoped, tag = 'input window, operand 0, single buffered']
    #allocation3 [shape = 's32[1]{0}', space=sflag, size = 0x4, scoped, tag = 'scoped memory for actor_nw_forward.1']
    #allocation4 [shape = 'u8[16384]{0}', space=vmem, size = 0x4000, scoped, tag = 'input window, operand 1, single buffered']
    #allocation5 [shape = 's32[1]{0}', space=sflag, size = 0x4, scoped, tag = 'scoped memory for actor_nw_forward.1']
    #allocation6 [shape = 'u8[65536]{0}', space=vmem, size = 0x10000, scoped, tag = 'input window, operand 2, single buffered']
    #allocation7 [shape = 'u8[65536]{0}', space=vmem, size = 0x10000, scoped, tag = 'input window, operand 3, single buffered']
    #allocation8 [shape = 's32[1]{0}', space=sflag, size = 0x4, scoped, tag = 'scoped memory for actor_nw_forward.1']
    %10 = vsyncpa [#allocation3], 0
    %11 = vsyncpa [#allocation5], 0
    %12 = vsyncpa [#allocation8], 0
    // Predicated region
    $region2: #{actor_nw_forward.1} parent=1 // pred_check
      _
    $region3: #{actor_nw_forward.1} parent=1 // pred_check_branch
      %14 = sbr.rel (0) target = $region5
    $region4: #{actor_nw_forward.1} parent=1 // pred_region
      %s16 = ssub.s32 128, 128
      %17 = vsyncadd [#allocation3], %s16
      %s19 = sshll.u32 [#allocation2], 4
      %s20 = int_to_ptr.vmem [resolvable:$true] %s19
      %22 = dma.hbm_to_vmem [thread:$0]  %s0, 128, %s20, [#allocation3]
    $region5: #{actor_nw_forward.1} parent=1 // pred_fallthru
      _
    // Predicated region
    $region6: #{actor_nw_forward.1} parent=1 // pred_check
      _
    $region7: #{actor_nw_forward.1} parent=1 // pred_check_branch
      %24 = sbr.rel (0) target = $region9
    $region8: #{actor_nw_forward.1} parent=1 // pred_region
      %s26 = ssub.s32 512, 512
      %27 = vsyncadd [#allocation5], %s26
      %s28 = sshll.u32 [#allocation4], 4
      %s29 = int_to_ptr.vmem [resolvable:$true] %s28
      %34 = dma.hbm_to_vmem [thread:$0]  %s1, 512, %s29, [#allocation5], 128, 128, 8
    $region9: #{actor_nw_forward.1} parent=1 // pred_fallthru
      _
    // Predicated region
    $region10: #{actor_nw_forward.1} parent=1 // pred_check
      _
    $region11: #{actor_nw_forward.1} parent=1 // pred_check_branch
      %36 = sbr.rel (0) target = $region13
    $region12: #{actor_nw_forward.1} parent=1 // pred_region
      %s38 = ssub.s32 2048, 2048
      %39 = vsyncadd [#allocation5], %s38
      %s40 = sshll.u32 [#allocation6], 4
      %s41 = int_to_ptr.vmem [resolvable:$true] %s40
      %46 = dma.hbm_to_vmem [thread:$0]  %s2, 2048, %s41, [#allocation5], 128, 128, 8
    $region13: #{actor_nw_forward.1} parent=1 // pred_fallthru
      _
    // Predicated region
    $region14: #{actor_nw_forward.1} parent=1 // pred_check
      _
    $region15: #{actor_nw_forward.1} parent=1 // pred_check_branch
      %48 = sbr.rel (0) target = $region17
    $region16: #{actor_nw_forward.1} parent=1 // pred_region
      %s50 = ssub.s32 2048, 2048
      %51 = vsyncadd [#allocation8], %s50
      %s52 = sshll.u32 [#allocation7], 4
      %s53 = int_to_ptr.vmem [resolvable:$true] %s52
      %58 = dma.hbm_to_vmem [thread:$0]  %s3, 2048, %s53, [#allocation8], 128, 128, 8
    $region17: #{actor_nw_forward.1} parent=1 // pred_fallthru
      _
    // Predicated region
    $region18: #{actor_nw_forward.1} parent=1 // pred_check
      _
    $region19: #{actor_nw_forward.1} parent=1 // pred_check_branch
      %60 = sbr.rel (0) target = $region21
    $region20: #{actor_nw_forward.1} parent=1 // pred_region
      _
    $region21: #{actor_nw_forward.1} parent=1 // pred_fallthru
      _
    // Predicated region
    $region22: #{actor_nw_forward.1} parent=1 // pred_check
      _
    $region23: #{actor_nw_forward.1} parent=1 // pred_check_branch
      %62 = sbr.rel (0) target = $region25
    $region24: #{actor_nw_forward.1} parent=1 // pred_region
      %63 = dma.done [#allocation3], 128
    $region25: #{actor_nw_forward.1} parent=1 // pred_fallthru
      _
    // Predicated region
    $region26: #{actor_nw_forward.1} parent=1 // pred_check
      _
    $region27: #{actor_nw_forward.1} parent=1 // pred_check_branch
      %65 = sbr.rel (0) target = $region29
    $region28: #{actor_nw_forward.1} parent=1 // pred_region
      %66 = dma.done [#allocation5], 512
    $region29: #{actor_nw_forward.1} parent=1 // pred_fallthru
      _
    // Predicated region
    $region30: #{actor_nw_forward.1} parent=1 // pred_check
      _
    $region31: #{actor_nw_forward.1} parent=1 // pred_check_branch
      %68 = sbr.rel (0) target = $region33
    $region32: #{actor_nw_forward.1} parent=1 // pred_region
      %69 = dma.done [#allocation5], 2048
    $region33: #{actor_nw_forward.1} parent=1 // pred_fallthru
      _
    // Predicated region
    $region34: #{actor_nw_forward.1} parent=1 // pred_check
      _
    $region35: #{actor_nw_forward.1} parent=1 // pred_check_branch
      %71 = sbr.rel (0) target = $region37
    $region36: #{actor_nw_forward.1} parent=1 // pred_region
      %72 = dma.done [#allocation8], 2048
    $region37: #{actor_nw_forward.1} parent=1 // pred_fallthru
      _
    %v73 = vlaneseq
    %v74 = vand.u32 %v73, 127
    %vm75 = vcmp.lt.s32.totalorder %v74, 100
    %v76 = vsel %vm75, 1, 0
    %v77 = vcvt.s32.f32 %v76
    %v78 = vld [vmem:[%s4] sm:$0xff]
    %v79 = vld [vmem:[#allocation2] sm:$0xff]
    %v80 = vld [vmem:[#allocation4] sm:$0xff]
    %v81 = vld [vmem:[#allocation4 + $0x8] sm:$0xff]
    %v82 = vld [vmem:[#allocation4 + $0x10] sm:$0xff]
    %v83 = vld [vmem:[#allocation4 + $0x18] sm:$0xff]
    %v84 = vlaneseq
    %v85 = vshrl.u32 %v84, 7
    %v86 = vsub.s32 0, %v85
    %v87 = vrot.slane %v78, %v86
    %vm88 = vcmask 261120
    %v90 = vsel %vm88, %v79, 0
    %92 = vmatprep.subr.mxu0 0.0
    %93 = vmatpush1.msra.mxu0 %v80
    %94 = vmatprep.subr.mxu0 0.0
    %95 = vmatpush1.msra.mxu0 %v81
    %96 = vmatprep.subr.mxu0 0.0
    %97 = vmatpush1.msra.mxu0 %v82
    %98 = vmatprep.subr.mxu0 0.0
    %99 = vmatpush1.msra.mxu0 %v83
    %100 = vmatprep.subr.mxu0 0.0
    %101 = vmatpush1.msra.mxu0 0.0
    %102 = vmatprep.subr.mxu0 0.0
    %103 = vmatpush1.msra.mxu0 0.0
    %104 = vmatprep.subr.mxu0 0.0
    %105 = vmatpush1.msra.mxu0 0.0
    %106 = vmatprep.subr.mxu0 0.0
    %107 = vmatpush1.msra.mxu0 0.0
    %108 = vmatprep.subr.mxu0 0.0
    %109 = vmatpush1.msra.mxu0 0.0
    %110 = vmatprep.subr.mxu0 0.0
    %111 = vmatpush1.msra.mxu0 0.0
    %112 = vmatprep.subr.mxu0 0.0
    %113 = vmatpush1.msra.mxu0 0.0
    %114 = vmatprep.subr.mxu0 0.0
    %115 = vmatpush1.msra.mxu0 0.0
    %116 = vmatprep.subr.mxu0 0.0
    %117 = vmatpush1.msra.mxu0 0.0
    %118 = vmatprep.subr.mxu0 0.0
    %119 = vmatpush1.msra.mxu0 0.0
    %120 = vmatprep.subr.mxu0 0.0
    %121 = vmatpush1.msra.mxu0 0.0
    %122 = vmatprep.subr.mxu0 0.0
    %123 = vmatpush1.msra.mxu0 0.0
    %124 = vmatprep.subr.mxu0 0.0
    %125 = vmatpush1.msra.mxu0 0.0
    %126 = vmatprep.subr.mxu0 0.0
    %127 = vmatpush1.msra.mxu0 0.0
    %128 = vmatprep.subr.mxu0 0.0
    %129 = vmatpush1.msra.mxu0 0.0
    %130 = vmatprep.subr.mxu0 0.0
    %131 = vmatpush1.msra.mxu0 0.0
    %132 = vmatprep.subr.mxu0 0.0
    %133 = vmatpush1.msra.mxu0 0.0
    %134 = vmatprep.subr.mxu0 0.0
    %135 = vmatpush1.msra.mxu0 0.0
    %136 = vmatprep.subr.mxu0 0.0
    %137 = vmatpush1.msra.mxu0 0.0
    %138 = vmatprep.subr.mxu0 0.0
    %139 = vmatpush1.msra.mxu0 0.0
    %140 = vmatprep.subr.mxu0 0.0
    %141 = vmatpush1.msra.mxu0 0.0
    %142 = vmatprep.subr.mxu0 0.0
    %143 = vmatpush1.msra.mxu0 0.0
    %144 = vmatprep.subr.mxu0 0.0
    %145 = vmatpush1.msra.mxu0 0.0
    %146 = vmatprep.subr.mxu0 0.0
    %147 = vmatpush1.msra.mxu0 0.0
    %148 = vmatprep.subr.mxu0 0.0
    %149 = vmatpush1.msra.mxu0 0.0
    %150 = vmatprep.subr.mxu0 0.0
    %151 = vmatpush1.msra.mxu0 0.0
    %152 = vmatprep.subr.mxu0 0.0
    %153 = vmatpush1.msra.mxu0 0.0
    %154 = vmatprep.subr.mxu0 0.0
    %155 = vmatpush1.msra.mxu0 0.0
    %156 = vmatprep.mubr.f32.mxu0 0.0
    %157 = vmatmul.mubr.f32.gmra.mrb[0].mxu0 %v90
    %v158 = vpop.f32.mrb[0].mxu0
    %v159 = vadd.f32 %v87, %v158
    %v160 = vpop.f32.mrb[0].mxu0
    %161 = vdwg.mxu0
    %vm162 = vcmp.ge.f32.partialorder %v159, 0.0
    %v163 = vmul.f32 %v159, 0.01
    %v164 = vsel %vm162, %v159, %v163
    %165 = vadd.xlane.f32.xlu0 %v164
    %v166 = vpop.xlane.xlu0 %165
    %v167 = vmul.f32 %v166, 0.01
    %v168 = vsub.f32 %v164, %v167
    %v169 = vmul.f32 %v168, %v77
    %v170 = vmul.f32 %v169, %v169
    %171 = vadd.xlane.f32.xlu0 %v170
    %v172 = vpop.xlane.xlu0 %171
    %v173 = vmul.f32 %v172, 0.01
    %v174 = vadd.f32 %v173, 1e-05
    %v175 = vrsqrt.pop %v174
    %v176 = vmul.f32 %v169, %v175
    %v177 = vlaneseq
    %v178 = vshrl.u32 %v177, 7
    %v179 = vsub.s32 1, %v178
    %v180 = vrot.slane %v78, %v179
    %v181 = vmul.f32 %v176, %v180
    %v182 = vlaneseq
    %v183 = vshrl.u32 %v182, 7
    %v184 = vsub.s32 2, %v183
    %v185 = vrot.slane %v78, %v184
    %v186 = vadd.f32 %v181, %v185
    %v187 = vld [vmem:[#allocation6] sm:$0xff]
    %v188 = vld [vmem:[#allocation6 + $0x8] sm:$0xff]
    %v189 = vld [vmem:[#allocation6 + $0x10] sm:$0xff]
    %v190 = vld [vmem:[#allocation6 + $0x18] sm:$0xff]
    %v191 = vld [vmem:[#allocation6 + $0x20] sm:$0xff]
    %v192 = vld [vmem:[#allocation6 + $0x28] sm:$0xff]
    %v193 = vld [vmem:[#allocation6 + $0x30] sm:$0xff]
    %v194 = vld [vmem:[#allocation6 + $0x38] sm:$0xff]
    %v195 = vld [vmem:[#allocation6 + $0x40] sm:$0xff]
    %v196 = vld [vmem:[#allocation6 + $0x48] sm:$0xff]
    %v197 = vld [vmem:[#allocation6 + $0x50] sm:$0xff]
    %v198 = vld [vmem:[#allocation6 + $0x58] sm:$0xff]
    %v199 = vld [vmem:[#allocation6 + $0x60] sm:$0xff]
    %v200 = vld [vmem:[#allocation6 + $0x68] sm:$0xff]
    %v201 = vld [vmem:[#allocation6 + $0x70] sm:$0xff]
    %v202 = vld [vmem:[#allocation6 + $0x78] sm:$0xff]
    %v203 = vlaneseq
    %v204 = vshrl.u32 %v203, 7
    %v205 = vsub.s32 3, %v204
    %v206 = vrot.slane %v78, %v205
    %207 = vmatprep.subr.mxu0 0.0
    %208 = vmatpush1.msra.mxu0 %v187
    %209 = vmatprep.subr.mxu0 0.0
    %210 = vmatpush1.msra.mxu0 %v188
    %211 = vmatprep.subr.mxu0 0.0
    %212 = vmatpush1.msra.mxu0 %v189
    %213 = vmatprep.subr.mxu0 0.0
    %214 = vmatpush1.msra.mxu0 %v190
    %215 = vmatprep.subr.mxu0 0.0
    %216 = vmatpush1.msra.mxu0 %v191
    %217 = vmatprep.subr.mxu0 0.0
    %218 = vmatpush1.msra.mxu0 %v192
    %219 = vmatprep.subr.mxu0 0.0
    %220 = vmatpush1.msra.mxu0 %v193
    %221 = vmatprep.subr.mxu0 0.0
    %222 = vmatpush1.msra.mxu0 %v194
    %223 = vmatprep.subr.mxu0 0.0
    %224 = vmatpush1.msra.mxu0 %v195
    %225 = vmatprep.subr.mxu0 0.0
    %226 = vmatpush1.msra.mxu0 %v196
    %227 = vmatprep.subr.mxu0 0.0
    %228 = vmatpush1.msra.mxu0 %v197
    %229 = vmatprep.subr.mxu0 0.0
    %230 = vmatpush1.msra.mxu0 %v198
    %231 = vmatprep.subr.mxu0 0.0
    %232 = vmatpush1.msra.mxu0 %v199
    %233 = vmatprep.subr.mxu0 0.0
    %234 = vmatpush1.msra.mxu0 %v200
    %235 = vmatprep.subr.mxu0 0.0
    %236 = vmatpush1.msra.mxu0 %v201
    %237 = vmatprep.subr.mxu0 0.0
    %238 = vmatpush1.msra.mxu0 %v202
    %239 = vmatprep.subr.mxu0 0.0
    %240 = vmatpush1.msra.mxu0 0.0
    %241 = vmatprep.subr.mxu0 0.0
    %242 = vmatpush1.msra.mxu0 0.0
    %243 = vmatprep.subr.mxu0 0.0
    %244 = vmatpush1.msra.mxu0 0.0
    %245 = vmatprep.subr.mxu0 0.0
    %246 = vmatpush1.msra.mxu0 0.0
    %247 = vmatprep.subr.mxu0 0.0
    %248 = vmatpush1.msra.mxu0 0.0
    %249 = vmatprep.subr.mxu0 0.0
    %250 = vmatpush1.msra.mxu0 0.0
    %251 = vmatprep.subr.mxu0 0.0
    %252 = vmatpush1.msra.mxu0 0.0
    %253 = vmatprep.subr.mxu0 0.0
    %254 = vmatpush1.msra.mxu0 0.0
    %255 = vmatprep.subr.mxu0 0.0
    %256 = vmatpush1.msra.mxu0 0.0
    %257 = vmatprep.subr.mxu0 0.0
    %258 = vmatpush1.msra.mxu0 0.0
    %259 = vmatprep.subr.mxu0 0.0
    %260 = vmatpush1.msra.mxu0 0.0
    %261 = vmatprep.subr.mxu0 0.0
    %262 = vmatpush1.msra.mxu0 0.0
    %263 = vmatprep.subr.mxu0 0.0
    %264 = vmatpush1.msra.mxu0 0.0
    %265 = vmatprep.subr.mxu0 0.0
    %266 = vmatpush1.msra.mxu0 0.0
    %267 = vmatprep.subr.mxu0 0.0
    %268 = vmatpush1.msra.mxu0 0.0
    %269 = vmatprep.subr.mxu0 0.0
    %270 = vmatpush1.msra.mxu0 0.0
    %271 = vmatprep.mubr.f32.mxu0 0.0
    %272 = vmatmul.mubr.f32.gmra.mrb[0].mxu0 %v186
    %v273 = vpop.f32.mrb[0].mxu0
    %v274 = vadd.f32 %v206, %v273
    %v275 = vpop.f32.mrb[0].mxu0
    %276 = vdwg.mxu0
    %vm277 = vcmp.ge.f32.partialorder %v274, 0.0
    %v278 = vmul.f32 %v274, 0.01
    %v279 = vsel %vm277, %v274, %v278
    %280 = vadd.xlane.f32.xlu0 %v279
    %v281 = vpop.xlane.xlu0 %280
    %v282 = vmul.f32 %v281, 0.01
    %v283 = vsub.f32 %v279, %v282
    %v284 = vmul.f32 %v283, %v77
    %v285 = vmul.f32 %v284, %v284
    %286 = vadd.xlane.f32.xlu0 %v285
    %v287 = vpop.xlane.xlu0 %286
    %v288 = vmul.f32 %v287, 0.01
    %v289 = vadd.f32 %v288, 1e-05
    %v290 = vrsqrt.pop %v289
    %v291 = vmul.f32 %v284, %v290
    %v292 = vlaneseq
    %v293 = vshrl.u32 %v292, 7
    %v294 = vsub.s32 4, %v293
    %v295 = vrot.slane %v78, %v294
    %v296 = vmul.f32 %v291, %v295
    %v297 = vlaneseq
    %v298 = vshrl.u32 %v297, 7
    %v299 = vsub.s32 5, %v298
    %v300 = vrot.slane %v78, %v299
    %v301 = vadd.f32 %v296, %v300
    %v302 = vld [vmem:[#allocation7] sm:$0xff]
    %v303 = vld [vmem:[#allocation7 + $0x8] sm:$0xff]
    %v304 = vld [vmem:[#allocation7 + $0x10] sm:$0xff]
    %v305 = vld [vmem:[#allocation7 + $0x18] sm:$0xff]
    %v306 = vld [vmem:[#allocation7 + $0x20] sm:$0xff]
    %v307 = vld [vmem:[#allocation7 + $0x28] sm:$0xff]
    %v308 = vld [vmem:[#allocation7 + $0x30] sm:$0xff]
    %v309 = vld [vmem:[#allocation7 + $0x38] sm:$0xff]
    %v310 = vld [vmem:[#allocation7 + $0x40] sm:$0xff]
    %v311 = vld [vmem:[#allocation7 + $0x48] sm:$0xff]
    %v312 = vld [vmem:[#allocation7 + $0x50] sm:$0xff]
    %v313 = vld [vmem:[#allocation7 + $0x58] sm:$0xff]
    %v314 = vld [vmem:[#allocation7 + $0x60] sm:$0xff]
    %v315 = vld [vmem:[#allocation7 + $0x68] sm:$0xff]
    %v316 = vld [vmem:[#allocation7 + $0x70] sm:$0xff]
    %v317 = vld [vmem:[#allocation7 + $0x78] sm:$0xff]
    %v318 = vlaneseq
    %v319 = vshrl.u32 %v318, 7
    %v320 = vsub.s32 6, %v319
    %v321 = vrot.slane %v78, %v320
    %322 = vmatprep.subr.mxu0 0.0
    %323 = vmatpush1.msra.mxu0 %v302
    %324 = vmatprep.subr.mxu0 0.0
    %325 = vmatpush1.msra.mxu0 %v303
    %326 = vmatprep.subr.mxu0 0.0
    %327 = vmatpush1.msra.mxu0 %v304
    %328 = vmatprep.subr.mxu0 0.0
    %329 = vmatpush1.msra.mxu0 %v305
    %330 = vmatprep.subr.mxu0 0.0
    %331 = vmatpush1.msra.mxu0 %v306
    %332 = vmatprep.subr.mxu0 0.0
    %333 = vmatpush1.msra.mxu0 %v307
    %334 = vmatprep.subr.mxu0 0.0
    %335 = vmatpush1.msra.mxu0 %v308
    %336 = vmatprep.subr.mxu0 0.0
    %337 = vmatpush1.msra.mxu0 %v309
    %338 = vmatprep.subr.mxu0 0.0
    %339 = vmatpush1.msra.mxu0 %v310
    %340 = vmatprep.subr.mxu0 0.0
    %341 = vmatpush1.msra.mxu0 %v311
    %342 = vmatprep.subr.mxu0 0.0
    %343 = vmatpush1.msra.mxu0 %v312
    %344 = vmatprep.subr.mxu0 0.0
    %345 = vmatpush1.msra.mxu0 %v313
    %346 = vmatprep.subr.mxu0 0.0
    %347 = vmatpush1.msra.mxu0 %v314
    %348 = vmatprep.subr.mxu0 0.0
    %349 = vmatpush1.msra.mxu0 %v315
    %350 = vmatprep.subr.mxu0 0.0
    %351 = vmatpush1.msra.mxu0 %v316
    %352 = vmatprep.subr.mxu0 0.0
    %353 = vmatpush1.msra.mxu0 %v317
    %354 = vmatprep.subr.mxu0 0.0
    %355 = vmatpush1.msra.mxu0 0.0
    %356 = vmatprep.subr.mxu0 0.0
    %357 = vmatpush1.msra.mxu0 0.0
    %358 = vmatprep.subr.mxu0 0.0
    %359 = vmatpush1.msra.mxu0 0.0
    %360 = vmatprep.subr.mxu0 0.0
    %361 = vmatpush1.msra.mxu0 0.0
    %362 = vmatprep.subr.mxu0 0.0
    %363 = vmatpush1.msra.mxu0 0.0
    %364 = vmatprep.subr.mxu0 0.0
    %365 = vmatpush1.msra.mxu0 0.0
    %366 = vmatprep.subr.mxu0 0.0
    %367 = vmatpush1.msra.mxu0 0.0
    %368 = vmatprep.subr.mxu0 0.0
    %369 = vmatpush1.msra.mxu0 0.0
    %370 = vmatprep.subr.mxu0 0.0
    %371 = vmatpush1.msra.mxu0 0.0
    %372 = vmatprep.subr.mxu0 0.0
    %373 = vmatpush1.msra.mxu0 0.0
    %374 = vmatprep.subr.mxu0 0.0
    %375 = vmatpush1.msra.mxu0 0.0
    %376 = vmatprep.subr.mxu0 0.0
    %377 = vmatpush1.msra.mxu0 0.0
    %378 = vmatprep.subr.mxu0 0.0
    %379 = vmatpush1.msra.mxu0 0.0
    %380 = vmatprep.subr.mxu0 0.0
    %381 = vmatpush1.msra.mxu0 0.0
    %382 = vmatprep.subr.mxu0 0.0
    %383 = vmatpush1.msra.mxu0 0.0
    %384 = vmatprep.subr.mxu0 0.0
    %385 = vmatpush1.msra.mxu0 0.0
    %386 = vmatprep.mubr.f32.mxu0 0.0
    %387 = vmatmul.mubr.f32.gmra.mrb[0].mxu0 %v301
    %v388 = vpop.f32.mrb[0].mxu0
    %v389 = vadd.f32 %v321, %v388
    %v390 = vpop.f32.mrb[0].mxu0
    %391 = vdwg.mxu0
    %392 = vmax.xlane.f32.xlu0 %v389
    %v393 = vpop.xlane.xlu0 %392
    %v394 = vsub.f32 %v389, %v393
    %v395 = vmul.f32 %v394, 1.442695
    %v396 = vpow.pop %v395
    %397 = vadd.xlane.f32.xlu0 %v396
    %v398 = vpop.xlane.xlu0 %397
    %v399 = vlog2.pop %v398
    %v400 = vmul.f32 %v399, 0.6931472
    %v401 = vadd.f32 %v393, %v400
    %vm402 = vcmp.eq.s32.totalorder %v74, 127
    %v403 = vsel %vm402, %v401, %v389
    %404 = vst [vmem:[%s5] sm:$0xff] %v403
    // Predicated region
    $region38: #{actor_nw_forward.1} parent=1 // pred_check
      _
    $region39: #{actor_nw_forward.1} parent=1 // pred_check_branch
      %406 = sbr.rel (0) target = $region41
    $region40: #{actor_nw_forward.1} parent=1 // pred_region
      _
    $region41: #{actor_nw_forward.1} parent=1 // pred_fallthru
      _
    // Predicated region
    $region42: #{actor_nw_forward.1} parent=1 // pred_check
      _
    $region43: #{actor_nw_forward.1} parent=1 // pred_check_branch
      %408 = sbr.rel (0) target = $region45
    $region44: #{actor_nw_forward.1} parent=1 // pred_region
      _
    $region45: #{actor_nw_forward.1} parent=1 // pred_fallthru
      _
    %409 = vsyncpa [#allocation3], 1
    %410 = vsyncpa [#allocation5], 1
    %411 = vsyncpa [#allocation8], 1

</llo_original>
